<compile_context>
chip_gen: v5e
topology: v5e:2x2
jax: 0.10.0
libtpu: 0.0.40
codegen_flags: <defaults>
</compile_context>

<pallas_src>
import functools

import jax
import jax.numpy as jnp
from jax.experimental import pallas as pl
from jax.experimental.pallas import tpu as pltpu

HIDDEN = 256   # fc1/fc2 width from the module
LANE = 128     # TPU lane width
SUBPACK = 16   # bf16 sublane packing granularity


def _round_up(x, m):
    return (x + m - 1) // m * m


def actor_kernel(x_ref, w1_ref, b1_ref, w2_ref, b2_ref, w3_ref, b3_ref, o_ref):
    # fc1 + relu: bf16 operands on the MXU, f32 accumulate + f32 elementwise.
    x = x_ref[...].astype(jnp.bfloat16)
    h1 = jnp.dot(x, w1_ref[...], preferred_element_type=jnp.float32) + b1_ref[...]
    h1 = jnp.maximum(h1, 0.0)
    # fc2 + relu
    h2 = jnp.dot(h1.astype(jnp.bfloat16), w2_ref[...],
                 preferred_element_type=jnp.float32) + b2_ref[...]
    h2 = jnp.maximum(h2, 0.0)
    # fc3 + 0.5*(tanh+1)
    logits = jnp.dot(h2.astype(jnp.bfloat16), w3_ref[...],
                     preferred_element_type=jnp.float32) + b3_ref[...]
    o_ref[...] = 0.5 * (jnp.tanh(logits) + 1.0)


def prepare_actor_params(w1, b1, w2, b2, w3, b3):
    """One-time parameter preparation (call at init / after optimizer step).

    Casts weights to bf16 and pads K up to a multiple of 16 and n_actions up
    to 128 so the per-call forward does zero parameter-side HBM work.
    Weights come in as (in_features, out_features), biases as (1, out) or (out,).
    """
    K = w1.shape[0]
    n_actions = w3.shape[1]
    K_pad = _round_up(max(K, SUBPACK), SUBPACK)      # bf16 sublane pack only
    N_pad = _round_up(max(n_actions, LANE), LANE)    # lane-dense output stores

    w1_p = jnp.pad(w1, ((0, K_pad - K), (0, 0))).astype(jnp.bfloat16)
    w2_p = w2.astype(jnp.bfloat16)
    w3_p = jnp.pad(w3, ((0, 0), (0, N_pad - n_actions))).astype(jnp.bfloat16)
    b1_p = b1.reshape(1, HIDDEN).astype(jnp.float32)
    b2_p = b2.reshape(1, HIDDEN).astype(jnp.float32)
    b3_p = jnp.pad(b3.reshape(1, n_actions).astype(jnp.float32),
                   ((0, 0), (0, N_pad - n_actions)))
    return (w1_p, b1_p, w2_p, b2_p, w3_p, b3_p)


@functools.partial(jax.jit, static_argnames=("n_actions", "block_b"))
def actor_forward(x, w1_p, b1_p, w2_p, b2_p, w3_p, b3_p, *,
                  n_actions, block_b=512):
    """Forward pass of Actor: 0.5 * (tanh(relu(relu(x@W1+b1)@W2+b2)@W3+b3) + 1).

    Parameters must come from `prepare_actor_params` (bf16, pre-padded).
    block_b of 512-1024 is a good default for large batches; VMEM is nowhere
    near a constraint on any generation even at 1024-row tiles.
    """
    B, K = x.shape
    K_pad = w1_p.shape[0]
    N_pad = w3_p.shape[1]

    # ---- batch tiling: hug B, ensure >=2 grid steps for big batches (v7x) ---
    B8 = _round_up(B, 8)
    num_steps = -(-B8 // block_b)                      # cdiv
    if num_steps == 1 and B8 >= 1024:
        num_steps = 2                                  # give v7x's 2nd TC work
    tb = _round_up(-(-B8 // num_steps), 8)             # multiple of 8, minimal pad
    B_pad = num_steps * tb

    # ---- pad x only when strictly required (zeros are exact no-ops) ---------
    if B_pad != B or K_pad != K:
        x_p = jnp.pad(x, ((0, B_pad - B), (0, K_pad - K)))
    else:
        x_p = x

    flops = 2 * B_pad * (K_pad * HIDDEN + HIDDEN * HIDDEN + HIDDEN * N_pad)
    bytes_accessed = (x_p.size * 4
                      + w1_p.size * 2 + w2_p.size * 2 + w3_p.size * 2
                      + b1_p.size * 4 + b2_p.size * 4 + b3_p.size * 4
                      + B_pad * N_pad * 4)

    out = pl.pallas_call(
        actor_kernel,
        out_shape=jax.ShapeDtypeStruct((B_pad, N_pad), jnp.float32),
        grid_spec=pltpu.PrefetchScalarGridSpec(
            num_scalar_prefetch=0,
            grid=(num_steps,),
            in_specs=[
                pl.BlockSpec((tb, K_pad), lambda i: (i, 0)),       # x: pipelined tile
                pl.BlockSpec((K_pad, HIDDEN), lambda i: (0, 0)),   # W1: resident
                pl.BlockSpec((1, HIDDEN), lambda i: (0, 0)),       # b1
                pl.BlockSpec((HIDDEN, HIDDEN), lambda i: (0, 0)),  # W2
                pl.BlockSpec((1, HIDDEN), lambda i: (0, 0)),       # b2
                pl.BlockSpec((HIDDEN, N_pad), lambda i: (0, 0)),   # W3 (padded cols)
                pl.BlockSpec((1, N_pad), lambda i: (0, 0)),        # b3 (padded)
            ],
            out_specs=pl.BlockSpec((tb, N_pad), lambda i: (i, 0)),
        ),
        compiler_params=pltpu.CompilerParams(
            dimension_semantics=("parallel",)),  # batch across v7x's 2 TCs
        cost_estimate=pl.CostEstimate(
            flops=flops,
            transcendentals=B_pad * N_pad,
            bytes_accessed=bytes_accessed),
    )(x_p, w1_p, b1_p, w2_p, b2_p, w3_p, b3_p)

    # Padded rows/cols carry garbage (relu(b1) flow-through) -- always slice.
    return out[:B, :n_actions]


def init_linear_params(key, in_features, out_features):
    """PyTorch-style init U(-1/sqrt(in), 1/sqrt(in)).

    Weight returned as (in_features, out_features) (pre-transposed for x @ W);
    bias as (1, out_features).
    """
    kw, kb = jax.random.split(key)
    bound = 1.0 / jnp.sqrt(jnp.float32(in_features))
    w = jax.random.uniform(kw, (in_features, out_features), jnp.float32,
                           minval=-bound, maxval=bound)
    b = jax.random.uniform(kb, (1, out_features), jnp.float32,
                           minval=-bound, maxval=bound)
    return w, b


def ref_forward_bf16(x, w1, b1, w2, b2, w3, b3):
    # Reference with the same bf16 operand rounding / f32 accumulation as the kernel.
    xb = x.astype(jnp.bfloat16)
    w1b, w2b, w3b = (w.astype(jnp.bfloat16) for w in (w1, w2, w3))
    h1 = jnp.maximum(jnp.dot(xb, w1b, preferred_element_type=jnp.float32) + b1, 0.0)
    h2 = jnp.maximum(jnp.dot(h1.astype(jnp.bfloat16), w2b,
                             preferred_element_type=jnp.float32) + b2, 0.0)
    logits = jnp.dot(h2.astype(jnp.bfloat16), w3b,
                     preferred_element_type=jnp.float32) + b3
    return 0.5 * (jnp.tanh(logits) + 1.0)


if __name__ == "__main__":
    # Small shapes consistent with the module: input_dims=8 -> fc1 in = 2*8 = 16.
    input_dims = 8
    n_actions = 4

    key = jax.random.PRNGKey(0)
    k_x, k_x2, k1, k2, k3 = jax.random.split(key, 5)

    w1, b1 = init_linear_params(k1, 2 * input_dims, HIDDEN)
    w2, b2 = init_linear_params(k2, HIDDEN, HIDDEN)
    w3, b3 = init_linear_params(k3, HIDDEN, n_actions)

    # One-time parameter prep (bf16 cast + padding) outside the forward path.
    params = prepare_actor_params(w1, b1, w2, b2, w3, b3)

    # Case 1: aligned batch (no x padding at all).
    batch = 8
    x = jax.random.normal(k_x, (batch, 2 * input_dims), jnp.float32)
    actions = actor_forward(x, *params, n_actions=n_actions)
    actions = jax.block_until_ready(actions)
    assert actions.shape == (batch, n_actions)
    ref = ref_forward_bf16(x, w1, b1, w2, b2, w3, b3)
    assert jnp.allclose(actions, ref, atol=1e-3, rtol=1e-3), "mismatch vs reference"

    # Case 2: awkward batch size to exercise the minimal-padding tile logic.
    batch2 = 20
    x2 = jax.random.normal(k_x2, (batch2, 2 * input_dims), jnp.float32)
    actions2 = actor_forward(x2, *params, n_actions=n_actions)
    actions2 = jax.block_until_ready(actions2)
    assert actions2.shape == (batch2, n_actions)
    ref2 = ref_forward_bf16(x2, w1, b1, w2, b2, w3, b3)
    assert jnp.allclose(actions2, ref2, atol=1e-3, rtol=1e-3), "mismatch vs reference"

    # TODO(synk): the PyTorch validity print (max>1 or min<0) is a host-side
    # debug check with no effect on the output; range verified here instead.
    assert float(jnp.max(actions)) <= 1.0 and float(jnp.min(actions)) >= 0.0
    assert float(jnp.max(actions2)) <= 1.0 and float(jnp.min(actions2)) >= 0.0

    print("KERNEL_OK")
</pallas_src>

<mosaic_0001>
module attributes {stable_mosaic.version = 11 : i64} {
  func.func @actor_kernel(%arg0: i32, %arg1: memref<8x16xf32, #tpu.memory_space<vmem>>, %arg2: memref<16x256xbf16, #tpu.memory_space<vmem>>, %arg3: memref<1x256xf32, #tpu.memory_space<vmem>>, %arg4: memref<256x256xbf16, #tpu.memory_space<vmem>>, %arg5: memref<1x256xf32, #tpu.memory_space<vmem>>, %arg6: memref<256x128xbf16, #tpu.memory_space<vmem>>, %arg7: memref<1x128xf32, #tpu.memory_space<vmem>>, %arg8: memref<8x128xf32, #tpu.memory_space<vmem>>) attributes {dimension_semantics = [#tpu.dimension_semantics<parallel>], iteration_bounds = array<i64: 1>, scalar_prefetch = 0 : i64, scratch_operands = 0 : i64, tpu.core_type = #tpu.core_type<tc>, window_params = [{transform_indices = @transform_0, window_bounds = array<i64: 8, 16>}, {pipeline_mode = #tpu.pipeline_mode<synchronous>, transform_indices = @transform_1, window_bounds = array<i64: 16, 256>}, {pipeline_mode = #tpu.pipeline_mode<synchronous>, transform_indices = @transform_2, window_bounds = array<i64: 1, 256>}, {pipeline_mode = #tpu.pipeline_mode<synchronous>, transform_indices = @transform_3, window_bounds = array<i64: 256, 256>}, {pipeline_mode = #tpu.pipeline_mode<synchronous>, transform_indices = @transform_4, window_bounds = array<i64: 1, 256>}, {pipeline_mode = #tpu.pipeline_mode<synchronous>, transform_indices = @transform_5, window_bounds = array<i64: 256, 128>}, {pipeline_mode = #tpu.pipeline_mode<synchronous>, transform_indices = @transform_6, window_bounds = array<i64: 1, 128>}, {transform_indices = @transform_7, window_bounds = array<i64: 8, 128>}]} {
    %c0 = arith.constant 0 : index
    %c0_0 = arith.constant 0 : index
    %0 = vector.load %arg1[%c0, %c0_0] : memref<8x16xf32, #tpu.memory_space<vmem>>, vector<8x16xf32>
    %1 = arith.truncf %0 : vector<8x16xf32> to vector<8x16xbf16>
    %c0_1 = arith.constant 0 : index
    %c0_2 = arith.constant 0 : index
    %2 = vector.load %arg2[%c0_1, %c0_2] : memref<16x256xbf16, #tpu.memory_space<vmem>>, vector<16x256xbf16>
    %cst = arith.constant dense<0.000000e+00> : vector<8x256xf32>
    %3 = tpu.matmul %1, %2, %cst {dimension_numbers = #tpu.dot_dimension_numbers<[1], [0], [0], [1], [0, 0, 1, 1], [], []>} : vector<8x16xbf16>, vector<16x256xbf16>, vector<8x256xf32> -> vector<8x256xf32>
    %c0_3 = arith.constant 0 : index
    %c0_4 = arith.constant 0 : index
    %4 = vector.load %arg3[%c0_3, %c0_4] : memref<1x256xf32, #tpu.memory_space<vmem>>, vector<1x256xf32>
    %5 = vector.broadcast %4 : vector<1x256xf32> to vector<8x256xf32>
    %6 = arith.addf %3, %5 : vector<8x256xf32>
    %cst_5 = arith.constant 0.000000e+00 : f32
    %7 = vector.broadcast %cst_5 : f32 to vector<8x256xf32>
    %8 = arith.maximumf %6, %7 : vector<8x256xf32>
    %9 = arith.truncf %8 : vector<8x256xf32> to vector<8x256xbf16>
    %c0_6 = arith.constant 0 : index
    %c0_7 = arith.constant 0 : index
    %10 = vector.load %arg4[%c0_6, %c0_7] : memref<256x256xbf16, #tpu.memory_space<vmem>>, vector<256x256xbf16>
    %cst_8 = arith.constant dense<0.000000e+00> : vector<8x256xf32>
    %11 = tpu.matmul %9, %10, %cst_8 {dimension_numbers = #tpu.dot_dimension_numbers<[1], [0], [0], [1], [0, 0, 1, 1], [], []>} : vector<8x256xbf16>, vector<256x256xbf16>, vector<8x256xf32> -> vector<8x256xf32>
    %c0_9 = arith.constant 0 : index
    %c0_10 = arith.constant 0 : index
    %12 = vector.load %arg5[%c0_9, %c0_10] : memref<1x256xf32, #tpu.memory_space<vmem>>, vector<1x256xf32>
    %13 = vector.broadcast %12 : vector<1x256xf32> to vector<8x256xf32>
    %14 = arith.addf %11, %13 : vector<8x256xf32>
    %cst_11 = arith.constant 0.000000e+00 : f32
    %15 = vector.broadcast %cst_11 : f32 to vector<8x256xf32>
    %16 = arith.maximumf %14, %15 : vector<8x256xf32>
    %17 = arith.truncf %16 : vector<8x256xf32> to vector<8x256xbf16>
    %c0_12 = arith.constant 0 : index
    %c0_13 = arith.constant 0 : index
    %18 = vector.load %arg6[%c0_12, %c0_13] : memref<256x128xbf16, #tpu.memory_space<vmem>>, vector<256x128xbf16>
    %cst_14 = arith.constant dense<0.000000e+00> : vector<8x128xf32>
    %19 = tpu.matmul %17, %18, %cst_14 {dimension_numbers = #tpu.dot_dimension_numbers<[1], [0], [0], [1], [0, 0, 1, 1], [], []>} : vector<8x256xbf16>, vector<256x128xbf16>, vector<8x128xf32> -> vector<8x128xf32>
    %c0_15 = arith.constant 0 : index
    %c0_16 = arith.constant 0 : index
    %20 = vector.load %arg7[%c0_15, %c0_16] : memref<1x128xf32, #tpu.memory_space<vmem>>, vector<1x128xf32>
    %21 = vector.broadcast %20 : vector<1x128xf32> to vector<8x128xf32>
    %22 = arith.addf %19, %21 : vector<8x128xf32>
    %23 = math.tanh %22 : vector<8x128xf32>
    %cst_17 = arith.constant 1.000000e+00 : f32
    %24 = vector.broadcast %cst_17 : f32 to vector<8x128xf32>
    %25 = arith.addf %23, %24 : vector<8x128xf32>
    %cst_18 = arith.constant 5.000000e-01 : f32
    %26 = vector.broadcast %cst_18 : f32 to vector<8x128xf32>
    %27 = arith.mulf %26, %25 : vector<8x128xf32>
    %c0_19 = arith.constant 0 : index
    %c0_20 = arith.constant 0 : index
    %28 = vector.load %arg8[%c0_19, %c0_20] : memref<8x128xf32, #tpu.memory_space<vmem>>, vector<8x128xf32>
    tpu.vector_store %arg8[%c0_19, %c0_20], %27 {strides = array<i32>} : memref<8x128xf32, #tpu.memory_space<vmem>>, vector<8x128xf32>,
    return
  }
  func.func @transform_0(%arg0: i32) -> (i32, i32) {
    %c0_i32 = arith.constant 0 : i32
    %c0_i32_0 = arith.constant 0 : i32
    return %arg0, %c0_i32 : i32, i32
  }
  func.func @transform_1(%arg0: i32) -> (i32, i32) {
    %c0_i32 = arith.constant 0 : i32
    %c0_i32_0 = arith.constant 0 : i32
    %c0_i32_1 = arith.constant 0 : i32
    return %c0_i32, %c0_i32_0 : i32, i32
  }
  func.func @transform_2(%arg0: i32) -> (i32, i32) {
    %c0_i32 = arith.constant 0 : i32
    %c0_i32_0 = arith.constant 0 : i32
    %c0_i32_1 = arith.constant 0 : i32
    return %c0_i32, %c0_i32_0 : i32, i32
  }
  func.func @transform_3(%arg0: i32) -> (i32, i32) {
    %c0_i32 = arith.constant 0 : i32
    %c0_i32_0 = arith.constant 0 : i32
    %c0_i32_1 = arith.constant 0 : i32
    return %c0_i32, %c0_i32_0 : i32, i32
  }
  func.func @transform_4(%arg0: i32) -> (i32, i32) {
    %c0_i32 = arith.constant 0 : i32
    %c0_i32_0 = arith.constant 0 : i32
    %c0_i32_1 = arith.constant 0 : i32
    return %c0_i32, %c0_i32_0 : i32, i32
  }
  func.func @transform_5(%arg0: i32) -> (i32, i32) {
    %c0_i32 = arith.constant 0 : i32
    %c0_i32_0 = arith.constant 0 : i32
    %c0_i32_1 = arith.constant 0 : i32
    return %c0_i32, %c0_i32_0 : i32, i32
  }
  func.func @transform_6(%arg0: i32) -> (i32, i32) {
    %c0_i32 = arith.constant 0 : i32
    %c0_i32_0 = arith.constant 0 : i32
    %c0_i32_1 = arith.constant 0 : i32
    return %c0_i32, %c0_i32_0 : i32, i32
  }
  func.func @transform_7(%arg0: i32) -> (i32, i32) {
    %c0_i32 = arith.constant 0 : i32
    %c0_i32_0 = arith.constant 0 : i32
    return %arg0, %c0_i32 : i32, i32
  }
}

</mosaic_0001>

<llo_original>
// kernel: actor_forward.1
$region0: #{actor_forward.1}
  #allocation0 [shape = 'u32[]', space=smem, size = 0x4, offset = 0x4, fixed_abs, tag = 'smem constant byte address 0x4 - core index']
  #allocation1 [shape = 'u32[72,128]{1,0:T(1,128)}', space=vmem, size = 0x9000, scoped, tag = 'internal scratch']
  %s0 = inlined_call_operand.hbm [shape: f32[8,16], index: 0, kind: input, shape index: {}]
  %s1 = inlined_call_operand.hbm [shape: bf16[16,256], index: 1, kind: input, shape index: {}]
  %s2 = inlined_call_operand.hbm [shape: f32[1,256], index: 2, kind: input, shape index: {}]
  %s3 = inlined_call_operand.hbm [shape: bf16[256,256], index: 3, kind: input, shape index: {}]
  %s4 = inlined_call_operand.vmem [shape: f32[1,256], index: 4, kind: input, shape index: {}]
  %s5 = inlined_call_operand.hbm [shape: bf16[256,128], index: 5, kind: input, shape index: {}]
  %s6 = inlined_call_operand.vmem [shape: f32[1,128], index: 6, kind: input, shape index: {}]
  %s7 = inlined_call_operand.vmem [shape: f32[8,128], index: 7, kind: output, shape index: {}]
  %s8 = sld [smem:[#allocation0]]
  $region58: #{actor_forward.1} parent=0
    _
  %s10 = ssub.s32 1, %s8
  %s11 = scalar_select 0, %s10, %s8
  $region1: #{actor_forward.1} parent=0
    #allocation2 [shape = 'u8[4096]{0}', space=vmem, size = 0x1000, scoped, tag = 'input window, operand 0, single buffered']
    #allocation3 [shape = 's32[1]{0}', space=sflag, size = 0x4, scoped, tag = 'scoped memory for actor_forward.1']
    #allocation4 [shape = 'u8[8192]{0}', space=vmem, size = 0x2000, scoped, tag = 'input window, operand 1, single buffered']
    #allocation5 [shape = 's32[1]{0}', space=sflag, size = 0x4, scoped, tag = 'scoped memory for actor_forward.1']
    #allocation6 [shape = 'u8[1024]{0}', space=vmem, size = 0x400, scoped, tag = 'input window, operand 2, single buffered']
    #allocation7 [shape = 'u8[131072]{0}', space=vmem, size = 0x20000, scoped, tag = 'input window, operand 3, single buffered']
    #allocation8 [shape = 's32[1]{0}', space=sflag, size = 0x4, scoped, tag = 'scoped memory for actor_forward.1']
    #allocation9 [shape = 'u8[65536]{0}', space=vmem, size = 0x10000, scoped, tag = 'input window, operand 5, single buffered']
    %12 = vsyncpa [#allocation3], 0
    %13 = vsyncpa [#allocation5], 0
    %14 = vsyncpa [#allocation8], 0
    // Predicated region
    $region2: #{actor_forward.1} parent=1 // pred_check
      _
    $region3: #{actor_forward.1} parent=1 // pred_check_branch
      %16 = sbr.rel (0) target = $region5
    $region4: #{actor_forward.1} parent=1 // pred_region
      %18 = vsyncadd [#allocation3], 0
      %s20 = sshll.u32 %s0, 4
      %s21 = int_to_ptr.hbm [resolvable:$true] %s20
      %s22 = sshll.u32 [#allocation2], 4
      %s23 = int_to_ptr.vmem [resolvable:$true] %s22
      %25 = dma.hbm_to_vmem [thread:$0]  %s21, 128, %s23, [#allocation3]
    $region5: #{actor_forward.1} parent=1 // pred_fallthru
      _
    // Predicated region
    $region6: #{actor_forward.1} parent=1 // pred_check
      _
    $region7: #{actor_forward.1} parent=1 // pred_check_branch
      %27 = sbr.rel (0) target = $region9
    $region8: #{actor_forward.1} parent=1 // pred_region
      %29 = vsyncadd [#allocation5], 0
      %s30 = sshll.u32 %s1, 4
      %s31 = int_to_ptr.hbm [resolvable:$true] %s30
      %s32 = sshll.u32 [#allocation4], 4
      %s33 = int_to_ptr.vmem [resolvable:$true] %s32
      %38 = dma.hbm_to_vmem [thread:$0]  %s31, 256, %s33, [#allocation5], 128, 128, 8
    $region9: #{actor_forward.1} parent=1 // pred_fallthru
      _
    // Predicated region
    $region10: #{actor_forward.1} parent=1 // pred_check
      _
    $region11: #{actor_forward.1} parent=1 // pred_check_branch
      %40 = sbr.rel (0) target = $region13
    $region12: #{actor_forward.1} parent=1 // pred_region
      %42 = vsyncadd [#allocation5], 0
      %s44 = sshll.u32 %s2, 4
      %s45 = int_to_ptr.hbm [resolvable:$true] %s44
      %s46 = sshll.u32 [#allocation6], 4
      %s47 = int_to_ptr.vmem [resolvable:$true] %s46
      %49 = dma.hbm_to_vmem [thread:$0]  %s45, 32, %s47, [#allocation5]
    $region13: #{actor_forward.1} parent=1 // pred_fallthru
      _
    // Predicated region
    $region14: #{actor_forward.1} parent=1 // pred_check
      _
    $region15: #{actor_forward.1} parent=1 // pred_check_branch
      %51 = sbr.rel (0) target = $region17
    $region16: #{actor_forward.1} parent=1 // pred_region
      %53 = vsyncadd [#allocation8], 0
      %s54 = sshll.u32 %s3, 4
      %s55 = int_to_ptr.hbm [resolvable:$true] %s54
      %s56 = sshll.u32 [#allocation7], 4
      %s57 = int_to_ptr.vmem [resolvable:$true] %s56
      %62 = dma.hbm_to_vmem [thread:$0]  %s55, 4096, %s57, [#allocation8], 128, 128, 8
    $region17: #{actor_forward.1} parent=1 // pred_fallthru
      _
    // Predicated region
    $region18: #{actor_forward.1} parent=1 // pred_check
      _
    $region19: #{actor_forward.1} parent=1 // pred_check_branch
      %64 = sbr.rel (0) target = $region21
    $region20: #{actor_forward.1} parent=1 // pred_region
      _
    $region21: #{actor_forward.1} parent=1 // pred_fallthru
      _
    // Predicated region
    $region22: #{actor_forward.1} parent=1 // pred_check
      _
    $region23: #{actor_forward.1} parent=1 // pred_check_branch
      %66 = sbr.rel (0) target = $region25
    $region24: #{actor_forward.1} parent=1 // pred_region
      %68 = vsyncadd [#allocation8], 0
      %s69 = sshll.u32 %s5, 4
      %s70 = int_to_ptr.hbm [resolvable:$true] %s69
      %s71 = sshll.u32 [#allocation9], 4
      %s72 = int_to_ptr.vmem [resolvable:$true] %s71
      %77 = dma.hbm_to_vmem [thread:$0]  %s70, 2048, %s72, [#allocation8], 64, 64, 4
    $region25: #{actor_forward.1} parent=1 // pred_fallthru
      _
    // Predicated region
    $region26: #{actor_forward.1} parent=1 // pred_check
      _
    $region27: #{actor_forward.1} parent=1 // pred_check_branch
      %79 = sbr.rel (0) target = $region29
    $region28: #{actor_forward.1} parent=1 // pred_region
      _
    $region29: #{actor_forward.1} parent=1 // pred_fallthru
      _
    // Predicated region
    $region30: #{actor_forward.1} parent=1 // pred_check
      _
    $region31: #{actor_forward.1} parent=1 // pred_check_branch
      %81 = sbr.rel (0) target = $region33
    $region32: #{actor_forward.1} parent=1 // pred_region
      %83 = dma.done [#allocation3], 128
    $region33: #{actor_forward.1} parent=1 // pred_fallthru
      _
    // Predicated region
    $region34: #{actor_forward.1} parent=1 // pred_check
      _
    $region35: #{actor_forward.1} parent=1 // pred_check_branch
      %85 = sbr.rel (0) target = $region37
    $region36: #{actor_forward.1} parent=1 // pred_region
      %87 = dma.done [#allocation5], 256
    $region37: #{actor_forward.1} parent=1 // pred_fallthru
      _
    // Predicated region
    $region38: #{actor_forward.1} parent=1 // pred_check
      _
    $region39: #{actor_forward.1} parent=1 // pred_check_branch
      %89 = sbr.rel (0) target = $region41
    $region40: #{actor_forward.1} parent=1 // pred_region
      %91 = dma.done [#allocation5], 32
    $region41: #{actor_forward.1} parent=1 // pred_fallthru
      _
    // Predicated region
    $region42: #{actor_forward.1} parent=1 // pred_check
      _
    $region43: #{actor_forward.1} parent=1 // pred_check_branch
      %93 = sbr.rel (0) target = $region45
    $region44: #{actor_forward.1} parent=1 // pred_region
      %95 = dma.done [#allocation8], 4096
    $region45: #{actor_forward.1} parent=1 // pred_fallthru
      _
    // Predicated region
    $region46: #{actor_forward.1} parent=1 // pred_check
      _
    $region47: #{actor_forward.1} parent=1 // pred_check_branch
      %97 = sbr.rel (0) target = $region49
    $region48: #{actor_forward.1} parent=1 // pred_region
      %99 = dma.done [#allocation8], 2048
    $region49: #{actor_forward.1} parent=1 // pred_fallthru
      _
    %v101 = vld [vmem:[#allocation2] sm:$0xff]
    %v102 = vpack.c.bf16 %v101, %v101
    %v103 = vld [vmem:[#allocation4] sm:$0xff]
    %v104 = vld [vmem:[#allocation4 + $0x8] sm:$0xff]
    %v105 = vld [vmem:[#allocation6] sm:$0x3]
    %v107 = vperm.slane %v105, 0
    %v108 = vperm.slane %v105, 1
    %v113 = vunpack.c.l.b16 %v103
    %v114 = vunpack.c.h.b16 %v103
    %v115 = vunpack.c.l.b16 %v104
    %v116 = vunpack.c.h.b16 %v104
    %v117 = vpack.c.b16 %v115, %v113
    %v118 = vpack.c.b16 %v116, %v114
    %vm121 = vcmask 130048
    %v123 = vsel %vm121, %v102, 0
    %125 = vmatpush.bf16.msra.mxu0 0
    %126 = vmatpush.bf16.msra.mxu0 0
    %127 = vmatpush.bf16.msra.mxu0 0
    %128 = vmatpush.bf16.msra.mxu0 0
    %129 = vmatpush.bf16.msra.mxu0 0
    %130 = vmatpush.bf16.msra.mxu0 0
    %131 = vmatpush.bf16.msra.mxu0 0
    %132 = vmatpush.bf16.msra.mxu0 %v117
    %133 = vmatmul.bf16.gmra.mxu0 %v123
    %v134 = vpop.f32.mrf.mxu0
    %v135 = vadd.f32 %v107, %v134
    %v136 = vpop.f32.mrf.mxu0
    %137 = vdwg.mxu0
    %138 = vmatpush.bf16.msra.mxu0 0
    %139 = vmatpush.bf16.msra.mxu0 0
    %140 = vmatpush.bf16.msra.mxu0 0
    %141 = vmatpush.bf16.msra.mxu0 0
    %142 = vmatpush.bf16.msra.mxu0 0
    %143 = vmatpush.bf16.msra.mxu0 0
    %144 = vmatpush.bf16.msra.mxu0 0
    %145 = vmatpush.bf16.msra.mxu0 %v118
    %146 = vmatmul.bf16.gmra.mxu0 %v123
    %v147 = vpop.f32.mrf.mxu0
    %v148 = vadd.f32 %v108, %v147
    %v149 = vpop.f32.mrf.mxu0
    %150 = vdwg.mxu0
    %v151 = vmax.f32 %v135, 0.0
    %v152 = vmax.f32 %v148, 0.0
    %v153 = vpack.c.bf16 %v151, %v151
    %v154 = vpack.c.bf16 %v152, %v152
    %v155 = vld [vmem:[#allocation7] sm:$0xff]
    %v156 = vld [vmem:[#allocation7 + $0x8] sm:$0xff]
    %v157 = vld [vmem:[#allocation7 + $0x10] sm:$0xff]
    %v158 = vld [vmem:[#allocation7 + $0x18] sm:$0xff]
    %v159 = vld [vmem:[#allocation7 + $0x20] sm:$0xff]
    %v160 = vld [vmem:[#allocation7 + $0x28] sm:$0xff]
    %v161 = vld [vmem:[#allocation7 + $0x30] sm:$0xff]
    %v162 = vld [vmem:[#allocation7 + $0x38] sm:$0xff]
    %v163 = vld [vmem:[#allocation7 + $0x40] sm:$0xff]
    %v164 = vld [vmem:[#allocation7 + $0x48] sm:$0xff]
    %v165 = vld [vmem:[#allocation7 + $0x50] sm:$0xff]
    %v166 = vld [vmem:[#allocation7 + $0x58] sm:$0xff]
    %v167 = vld [vmem:[#allocation7 + $0x60] sm:$0xff]
    %v168 = vld [vmem:[#allocation7 + $0x68] sm:$0xff]
    %v169 = vld [vmem:[#allocation7 + $0x70] sm:$0xff]
    %v170 = vld [vmem:[#allocation7 + $0x78] sm:$0xff]
    %v171 = vld [vmem:[#allocation7 + $0x80] sm:$0xff]
    %v172 = vld [vmem:[#allocation7 + $0x88] sm:$0xff]
    %v173 = vld [vmem:[#allocation7 + $0x90] sm:$0xff]
    %v174 = vld [vmem:[#allocation7 + $0x98] sm:$0xff]
    %v175 = vld [vmem:[#allocation7 + $0xa0] sm:$0xff]
    %v176 = vld [vmem:[#allocation7 + $0xa8] sm:$0xff]
    %v177 = vld [vmem:[#allocation7 + $0xb0] sm:$0xff]
    %v178 = vld [vmem:[#allocation7 + $0xb8] sm:$0xff]
    %v179 = vld [vmem:[#allocation7 + $0xc0] sm:$0xff]
    %v180 = vld [vmem:[#allocation7 + $0xc8] sm:$0xff]
    %v181 = vld [vmem:[#allocation7 + $0xd0] sm:$0xff]
    %v182 = vld [vmem:[#allocation7 + $0xd8] sm:$0xff]
    %v183 = vld [vmem:[#allocation7 + $0xe0] sm:$0xff]
    %v184 = vld [vmem:[#allocation7 + $0xe8] sm:$0xff]
    %v185 = vld [vmem:[#allocation7 + $0xf0] sm:$0xff]
    %v186 = vld [vmem:[#allocation7 + $0xf8] sm:$0xff]
    %v187 = vld [vmem:[%s4] sm:$0x3]
    %v189 = vperm.slane %v187, 0
    %v190 = vperm.slane %v187, 1
    %v225 = vunpack.c.l.b16 %v155
    %v226 = vunpack.c.h.b16 %v155
    %v227 = vunpack.c.l.b16 %v156
    %v228 = vunpack.c.h.b16 %v156
    %v229 = vunpack.c.l.b16 %v157
    %v230 = vunpack.c.h.b16 %v157
    %v231 = vunpack.c.l.b16 %v158
    %v232 = vunpack.c.h.b16 %v158
    %v233 = vunpack.c.l.b16 %v159
    %v234 = vunpack.c.h.b16 %v159
    %v235 = vunpack.c.l.b16 %v160
    %v236 = vunpack.c.h.b16 %v160
    %v237 = vunpack.c.l.b16 %v161
    %v238 = vunpack.c.h.b16 %v161
    %v239 = vunpack.c.l.b16 %v162
    %v240 = vunpack.c.h.b16 %v162
    %v241 = vunpack.c.l.b16 %v163
    %v242 = vunpack.c.h.b16 %v163
    %v243 = vunpack.c.l.b16 %v164
    %v244 = vunpack.c.h.b16 %v164
    %v245 = vunpack.c.l.b16 %v165
    %v246 = vunpack.c.h.b16 %v165
    %v247 = vunpack.c.l.b16 %v166
    %v248 = vunpack.c.h.b16 %v166
    %v249 = vunpack.c.l.b16 %v167
    %v250 = vunpack.c.h.b16 %v167
    %v251 = vunpack.c.l.b16 %v168
    %v252 = vunpack.c.h.b16 %v168
    %v253 = vunpack.c.l.b16 %v169
    %v254 = vunpack.c.h.b16 %v169
    %v255 = vunpack.c.l.b16 %v170
    %v256 = vunpack.c.h.b16 %v170
    %v257 = vunpack.c.l.b16 %v171
    %v258 = vunpack.c.h.b16 %v171
    %v259 = vunpack.c.l.b16 %v172
    %v260 = vunpack.c.h.b16 %v172
    %v261 = vunpack.c.l.b16 %v173
    %v262 = vunpack.c.h.b16 %v173
    %v263 = vunpack.c.l.b16 %v174
    %v264 = vunpack.c.h.b16 %v174
    %v265 = vunpack.c.l.b16 %v175
    %v266 = vunpack.c.h.b16 %v175
    %v267 = vunpack.c.l.b16 %v176
    %v268 = vunpack.c.h.b16 %v176
    %v269 = vunpack.c.l.b16 %v177
    %v270 = vunpack.c.h.b16 %v177
    %v271 = vunpack.c.l.b16 %v178
    %v272 = vunpack.c.h.b16 %v178
    %v273 = vunpack.c.l.b16 %v179
    %v274 = vunpack.c.h.b16 %v179
    %v275 = vunpack.c.l.b16 %v180
    %v276 = vunpack.c.h.b16 %v180
    %v277 = vunpack.c.l.b16 %v181
    %v278 = vunpack.c.h.b16 %v181
    %v279 = vunpack.c.l.b16 %v182
    %v280 = vunpack.c.h.b16 %v182
    %v281 = vunpack.c.l.b16 %v183
    %v282 = vunpack.c.h.b16 %v183
    %v283 = vunpack.c.l.b16 %v184
    %v284 = vunpack.c.h.b16 %v184
    %v285 = vunpack.c.l.b16 %v185
    %v286 = vunpack.c.h.b16 %v185
    %v287 = vunpack.c.l.b16 %v186
    %v288 = vunpack.c.h.b16 %v186
    %v289 = vpack.c.b16 %v227, %v225
    %v290 = vpack.c.b16 %v228, %v226
    %v291 = vpack.c.b16 %v231, %v229
    %v292 = vpack.c.b16 %v232, %v230
    %v293 = vpack.c.b16 %v235, %v233
    %v294 = vpack.c.b16 %v236, %v234
    %v295 = vpack.c.b16 %v239, %v237
    %v296 = vpack.c.b16 %v240, %v238
    %v297 = vpack.c.b16 %v243, %v241
    %v298 = vpack.c.b16 %v244, %v242
    %v299 = vpack.c.b16 %v247, %v245
    %v300 = vpack.c.b16 %v248, %v246
    %v301 = vpack.c.b16 %v251, %v249
    %v302 = vpack.c.b16 %v252, %v250
    %v303 = vpack.c.b16 %v255, %v253
    %v304 = vpack.c.b16 %v256, %v254
    %v305 = vpack.c.b16 %v259, %v257
    %v306 = vpack.c.b16 %v260, %v258
    %v307 = vpack.c.b16 %v263, %v261
    %v308 = vpack.c.b16 %v264, %v262
    %v309 = vpack.c.b16 %v267, %v265
    %v310 = vpack.c.b16 %v268, %v266
    %v311 = vpack.c.b16 %v271, %v269
    %v312 = vpack.c.b16 %v272, %v270
    %v313 = vpack.c.b16 %v275, %v273
    %v314 = vpack.c.b16 %v276, %v274
    %v315 = vpack.c.b16 %v279, %v277
    %v316 = vpack.c.b16 %v280, %v278
    %v317 = vpack.c.b16 %v283, %v281
    %v318 = vpack.c.b16 %v284, %v282
    %v319 = vpack.c.b16 %v287, %v285
    %v320 = vpack.c.b16 %v288, %v286
    %353 = vmatpush.bf16.msra.mxu0 %v303
    %354 = vmatpush.bf16.msra.mxu0 %v301
    %355 = vmatpush.bf16.msra.mxu0 %v299
    %356 = vmatpush.bf16.msra.mxu0 %v297
    %357 = vmatpush.bf16.msra.mxu0 %v295
    %358 = vmatpush.bf16.msra.mxu0 %v293
    %359 = vmatpush.bf16.msra.mxu0 %v291
    %360 = vmatpush.bf16.msra.mxu0 %v289
    %361 = vmatmul.bf16.gmra.mxu0 %v153
    %v362 = vpop.f32.mrf.mxu0
    %v363 = vadd.f32 %v189, %v362
    %v364 = vpop.f32.mrf.mxu0
    %365 = vdwg.mxu0
    %366 = vmatpush.bf16.msra.mxu0 %v319
    %367 = vmatpush.bf16.msra.mxu0 %v317
    %368 = vmatpush.bf16.msra.mxu0 %v315
    %369 = vmatpush.bf16.msra.mxu0 %v313
    %370 = vmatpush.bf16.msra.mxu0 %v311
    %371 = vmatpush.bf16.msra.mxu0 %v309
    %372 = vmatpush.bf16.msra.mxu0 %v307
    %373 = vmatpush.bf16.msra.mxu0 %v305
    %374 = vmatmul.bf16.gmra.mxu0 %v154
    %v375 = vpop.f32.mrf.mxu0
    %v376 = vadd.f32 %v363, %v375
    %v377 = vpop.f32.mrf.mxu0
    %378 = vdwg.mxu0
    %379 = vmatpush.bf16.msra.mxu0 %v304
    %380 = vmatpush.bf16.msra.mxu0 %v302
    %381 = vmatpush.bf16.msra.mxu0 %v300
    %382 = vmatpush.bf16.msra.mxu0 %v298
    %383 = vmatpush.bf16.msra.mxu0 %v296
    %384 = vmatpush.bf16.msra.mxu0 %v294
    %385 = vmatpush.bf16.msra.mxu0 %v292
    %386 = vmatpush.bf16.msra.mxu0 %v290
    %387 = vmatmul.bf16.gmra.mxu0 %v153
    %v388 = vpop.f32.mrf.mxu0
    %v389 = vadd.f32 %v190, %v388
    %v390 = vpop.f32.mrf.mxu0
    %391 = vdwg.mxu0
    %392 = vmatpush.bf16.msra.mxu0 %v320
    %393 = vmatpush.bf16.msra.mxu0 %v318
    %394 = vmatpush.bf16.msra.mxu0 %v316
    %395 = vmatpush.bf16.msra.mxu0 %v314
    %396 = vmatpush.bf16.msra.mxu0 %v312
    %397 = vmatpush.bf16.msra.mxu0 %v310
    %398 = vmatpush.bf16.msra.mxu0 %v308
    %399 = vmatpush.bf16.msra.mxu0 %v306
    %400 = vmatmul.bf16.gmra.mxu0 %v154
    %v401 = vpop.f32.mrf.mxu0
    %v402 = vadd.f32 %v389, %v401
    %v403 = vpop.f32.mrf.mxu0
    %404 = vdwg.mxu0
    %v405 = vmax.f32 %v376, 0.0
    %v406 = vmax.f32 %v402, 0.0
    %v407 = vpack.c.bf16 %v405, %v405
    %v408 = vpack.c.bf16 %v406, %v406
    %v409 = vld [vmem:[#allocation9] sm:$0xf]
    %v410 = vld [vmem:[#allocation9 + $0x4] sm:$0xf]
    %v411 = vld [vmem:[#allocation9 + $0x8] sm:$0xf]
    %v412 = vld [vmem:[#allocation9 + $0xc] sm:$0xf]
    %v413 = vld [vmem:[#allocation9 + $0x10] sm:$0xf]
    %v414 = vld [vmem:[#allocation9 + $0x14] sm:$0xf]
    %v415 = vld [vmem:[#allocation9 + $0x18] sm:$0xf]
    %v416 = vld [vmem:[#allocation9 + $0x1c] sm:$0xf]
    %v417 = vld [vmem:[#allocation9 + $0x20] sm:$0xf]
    %v418 = vld [vmem:[#allocation9 + $0x24] sm:$0xf]
    %v419 = vld [vmem:[#allocation9 + $0x28] sm:$0xf]
    %v420 = vld [vmem:[#allocation9 + $0x2c] sm:$0xf]
    %v421 = vld [vmem:[#allocation9 + $0x30] sm:$0xf]
    %v422 = vld [vmem:[#allocation9 + $0x34] sm:$0xf]
    %v423 = vld [vmem:[#allocation9 + $0x38] sm:$0xf]
    %v424 = vld [vmem:[#allocation9 + $0x3c] sm:$0xf]
    %v425 = vld [vmem:[#allocation9 + $0x40] sm:$0xf]
    %v426 = vld [vmem:[#allocation9 + $0x44] sm:$0xf]
    %v427 = vld [vmem:[#allocation9 + $0x48] sm:$0xf]
    %v428 = vld [vmem:[#allocation9 + $0x4c] sm:$0xf]
    %v429 = vld [vmem:[#allocation9 + $0x50] sm:$0xf]
    %v430 = vld [vmem:[#allocation9 + $0x54] sm:$0xf]
    %v431 = vld [vmem:[#allocation9 + $0x58] sm:$0xf]
    %v432 = vld [vmem:[#allocation9 + $0x5c] sm:$0xf]
    %v433 = vld [vmem:[#allocation9 + $0x60] sm:$0xf]
    %v434 = vld [vmem:[#allocation9 + $0x64] sm:$0xf]
    %v435 = vld [vmem:[#allocation9 + $0x68] sm:$0xf]
    %v436 = vld [vmem:[#allocation9 + $0x6c] sm:$0xf]
    %v437 = vld [vmem:[#allocation9 + $0x70] sm:$0xf]
    %v438 = vld [vmem:[#allocation9 + $0x74] sm:$0xf]
    %v439 = vld [vmem:[#allocation9 + $0x78] sm:$0xf]
    %v440 = vld [vmem:[#allocation9 + $0x7c] sm:$0xf]
    %v441 = vld [vmem:[%s6] sm:$0x1]
    %v443 = vperm.slane %v441, 0
    %v477 = vunpack.c.l.b16 %v409
    %v478 = vunpack.c.l.b16 %v410
    %v479 = vunpack.c.l.b16 %v411
    %v480 = vunpack.c.l.b16 %v412
    %v481 = vunpack.c.l.b16 %v413
    %v482 = vunpack.c.l.b16 %v414
    %v483 = vunpack.c.l.b16 %v415
    %v484 = vunpack.c.l.b16 %v416
    %v485 = vunpack.c.l.b16 %v417
    %v486 = vunpack.c.l.b16 %v418
    %v487 = vunpack.c.l.b16 %v419
    %v488 = vunpack.c.l.b16 %v420
    %v489 = vunpack.c.l.b16 %v421
    %v490 = vunpack.c.l.b16 %v422
    %v491 = vunpack.c.l.b16 %v423
    %v492 = vunpack.c.l.b16 %v424
    %v493 = vunpack.c.l.b16 %v425
    %v494 = vunpack.c.l.b16 %v426
    %v495 = vunpack.c.l.b16 %v427
    %v496 = vunpack.c.l.b16 %v428
    %v497 = vunpack.c.l.b16 %v429
    %v498 = vunpack.c.l.b16 %v430
    %v499 = vunpack.c.l.b16 %v431
    %v500 = vunpack.c.l.b16 %v432
    %v501 = vunpack.c.l.b16 %v433
    %v502 = vunpack.c.l.b16 %v434
    %v503 = vunpack.c.l.b16 %v435
    %v504 = vunpack.c.l.b16 %v436
    %v505 = vunpack.c.l.b16 %v437
    %v506 = vunpack.c.l.b16 %v438
    %v507 = vunpack.c.l.b16 %v439
    %v508 = vunpack.c.l.b16 %v440
    %v509 = vpack.c.b16 %v478, %v477
    %v510 = vpack.c.b16 %v480, %v479
    %v511 = vpack.c.b16 %v482, %v481
    %v512 = vpack.c.b16 %v484, %v483
    %v513 = vpack.c.b16 %v486, %v485
    %v514 = vpack.c.b16 %v488, %v487
    %v515 = vpack.c.b16 %v490, %v489
    %v516 = vpack.c.b16 %v492, %v491
    %v517 = vpack.c.b16 %v494, %v493
    %v518 = vpack.c.b16 %v496, %v495
    %v519 = vpack.c.b16 %v498, %v497
    %v520 = vpack.c.b16 %v500, %v499
    %v521 = vpack.c.b16 %v502, %v501
    %v522 = vpack.c.b16 %v504, %v503
    %v523 = vpack.c.b16 %v506, %v505
    %v524 = vpack.c.b16 %v508, %v507
    %541 = vmatpush.bf16.msra.mxu0 %v516
    %542 = vmatpush.bf16.msra.mxu0 %v515
    %543 = vmatpush.bf16.msra.mxu0 %v514
    %544 = vmatpush.bf16.msra.mxu0 %v513
    %545 = vmatpush.bf16.msra.mxu0 %v512
    %546 = vmatpush.bf16.msra.mxu0 %v511
    %547 = vmatpush.bf16.msra.mxu0 %v510
    %548 = vmatpush.bf16.msra.mxu0 %v509
    %549 = vmatmul.bf16.gmra.mxu0 %v407
    %v550 = vpop.f32.mrf.mxu0
    %v551 = vadd.f32 %v443, %v550
    %v552 = vpop.f32.mrf.mxu0
    %553 = vdwg.mxu0
    %554 = vmatpush.bf16.msra.mxu0 %v524
    %555 = vmatpush.bf16.msra.mxu0 %v523
    %556 = vmatpush.bf16.msra.mxu0 %v522
    %557 = vmatpush.bf16.msra.mxu0 %v521
    %558 = vmatpush.bf16.msra.mxu0 %v520
    %559 = vmatpush.bf16.msra.mxu0 %v519
    %560 = vmatpush.bf16.msra.mxu0 %v518
    %561 = vmatpush.bf16.msra.mxu0 %v517
    %562 = vmatmul.bf16.gmra.mxu0 %v408
    %v563 = vpop.f32.mrf.mxu0
    %v564 = vadd.f32 %v551, %v563
    %v565 = vpop.f32.mrf.mxu0
    %566 = vdwg.mxu0
    %v567 = vtanh.pop %v564
    %v568 = vadd.f32 %v567, 1.0
    %v569 = vmul.f32 %v568, 0.5
    %570 = vst [vmem:[%s7] sm:$0xff] %v569
    // Predicated region
    $region50: #{actor_forward.1} parent=1 // pred_check
      _
    $region51: #{actor_forward.1} parent=1 // pred_check_branch
      %572 = sbr.rel (0) target = $region53
    $region52: #{actor_forward.1} parent=1 // pred_region
      _
    $region53: #{actor_forward.1} parent=1 // pred_fallthru
      _
    // Predicated region
    $region54: #{actor_forward.1} parent=1 // pred_check
      _
    $region55: #{actor_forward.1} parent=1 // pred_check_branch
      %574 = sbr.rel (0) target = $region57
    $region56: #{actor_forward.1} parent=1 // pred_region
      _
    $region57: #{actor_forward.1} parent=1 // pred_fallthru
      _
    %575 = vsyncpa [#allocation3], 1
    %576 = vsyncpa [#allocation5], 1
    %577 = vsyncpa [#allocation8], 1

</llo_original>
